<compile_context>
chip_gen: v7x
topology: tpu7x:2x2x1
jax: 0.10.0
libtpu: 0.0.40
codegen_flags: <defaults>
</compile_context>

<pallas_src>
import functools

import jax
import jax.numpy as jnp
from jax.experimental import pallas as pl
from jax.experimental.pallas import tpu as pltpu


def _round_up(x, m):
    return pl.cdiv(x, m) * m


def _vmem_capacity_bytes():
    try:
        info = pltpu.get_tpu_info()
        return int(getattr(info, "vmem_capacity_bytes", 64 * 1024 * 1024))
    except Exception:
        return 64 * 1024 * 1024  # conservative (v7x per-TC VMEM)


def _pick_tiles(B, H, *, tb_max=128, tn_max=256):
    """Tile selection: big MXU fill, but keep >=2 batch tiles when possible
    so the 'parallel' batch axis can shard across both v7x TensorCores."""
    tb = min(tb_max, _round_up(B, 8))
    if B >= 16 and _round_up(B, tb) // tb < 2:
        tb = max(8, _round_up((B + 1) // 2, 8))
    tn = min(tn_max, _round_up(H, 128))
    return tb, tn


def prepare_evaluator_weights(w, tn):
    """Pad + cast the static evaluator weights ONCE (hoisted out of the hot
    path so the full HxH weight is not re-read/re-written every call)."""
    H = w.shape[0]
    assert w.shape == (H, H)
    hp = _round_up(H, tn)
    w_bf16 = w.astype(jnp.bfloat16)
    return jnp.pad(w_bf16, ((0, hp - H), (0, hp - H)))


def _judge_kernel(thr_ref, q_ref, gold_ref, gen_ref, w_ref, out_ref, acc_ref,
                  *, tb, tn, w_resident):
    """Grid = (batch_tile i [parallel], W-column tile j [arbitrary, inner]).

    thr_ref : SMEM (1,)          f32   decision threshold
    q_ref   : VMEM (TB, TN)      f32   question slice      (block (i, j))
    gold_ref: VMEM (TB, TN)      f32   golden slice        (block (i, j))
    gen_ref : VMEM (TB, Hp)      bf16  generated answer    (full K, resident over j)
    w_ref   : VMEM (Hp, Hp|TN)   bf16  evaluator weights   (resident or column tile)
    out_ref : VMEM (TB, 128)     i32   lane-dense judgement slab (block (i, 0))
    acc_ref : VMEM (3*TB, 128)   f32   lane-dense running [dot; |ctx|^2; |proj|^2]
    """
    j = pl.program_id(1)
    nj = pl.num_programs(1)

    @pl.when(j == 0)
    def _():
        acc_ref[...] = jnp.zeros_like(acc_ref)

    # "Prompt construction": condition this golden-answer slice on the question.
    ctx = gold_ref[...] + 0.5 * q_ref[...]                         # (TB, TN) f32

    # "Evaluator model": project the generated answer onto the current column
    # tile of the evaluator weights.  bf16 operands, f32 accumulation (MXU).
    if w_resident:
        col0 = pl.multiple_of(j * tn, tn)
        w_tile = w_ref[:, pl.ds(col0, tn)]                         # (Hp, TN) bf16
    else:
        w_tile = w_ref[...]                                        # (Hp, TN) bf16
    proj = jnp.dot(gen_ref[...], w_tile,
                   preferred_element_type=jnp.float32)             # (TB, TN) f32

    # Lane-dense accumulation: fold TN -> 128 lanes with lane-tile-aligned
    # slices + VPU adds (no XLU reduce, no sublane concat in the inner loop).
    def fold(x):
        acc = x[:, 0:128]
        for c in range(128, tn, 128):
            acc = acc + x[:, c:c + 128]
        return acc

    acc_ref[0:tb, :] += fold(ctx * proj)
    acc_ref[tb:2 * tb, :] += fold(ctx * ctx)
    acc_ref[2 * tb:3 * tb, :] += fold(proj * proj)

    @pl.when(j == nj - 1)
    def _():
        # Single cross-lane reduction over the whole (3*TB, 128) slab.
        sums = jnp.sum(acc_ref[...], axis=-1, keepdims=True)       # (3*TB, 1)
        dot = sums[0:tb]
        n_ctx = sums[tb:2 * tb]
        n_prj = sums[2 * tb:3 * tb]
        sim = dot * jax.lax.rsqrt(n_ctx * n_prj + 1e-6)            # (TB, 1) f32
        judge = (sim > thr_ref[0]).astype(jnp.int32)               # (TB, 1) i32
        # Lane-dense store: broadcast across the 128-lane axis -> unmasked vst.
        out_ref[...] = jnp.broadcast_to(judge, (tb, 128))


def _vmem_estimate_bytes(hp, tb, tn, w_resident):
    q = 2 * tb * tn * 4                     # double-buffered f32
    gold = 2 * tb * tn * 4
    gen = 2 * tb * hp * 2                   # double-buffered bf16 full-K
    w = 2 * hp * hp * 2 if w_resident else 2 * hp * tn * 2
    out = 2 * tb * 128 * 4
    acc = 3 * tb * 128 * 4
    return q + gold + gen + w + out + acc


def hallu_evaluator_forward(question_emb, golden_emb, generated_emb, w_prepared,
                            threshold, *, tb, tn, force_stream_w=False):
    """Returns int32 judgements of shape (batch,), one per example.

    `w_prepared` is the output of prepare_evaluator_weights (padded bf16)."""
    B, H = golden_emb.shape
    hp = w_prepared.shape[0]
    assert question_emb.shape == (B, H) and generated_emb.shape == (B, H)
    assert w_prepared.shape == (hp, hp) and w_prepared.dtype == jnp.bfloat16
    assert tb % 8 == 0 and tn % 128 == 0
    assert hp % tn == 0 and hp >= H

    bp = _round_up(B, tb)
    n_bt = bp // tb
    n_nt = hp // tn

    # Zero padding is exact for the dot / norm reductions (padded columns
    # contribute 0; padded rows are sliced away afterwards).
    def pad2(x, rows, cols, dtype):
        x = x.astype(dtype)
        return jnp.pad(x, ((0, rows - x.shape[0]), (0, cols - x.shape[1])))

    q_p = pad2(question_emb, bp, hp, jnp.float32)
    gold_p = pad2(golden_emb, bp, hp, jnp.float32)
    gen_p = pad2(generated_emb, bp, hp, jnp.bfloat16)   # bf16 MXU operand

    thr = jnp.asarray([threshold], dtype=jnp.float32)

    # W residency: if the bf16 weight fits comfortably in this chip's VMEM
    # (counting double-buffering conservatively), DMA it once and keep it
    # resident across all batch tiles.  Otherwise stream column tiles, which
    # the large TB now amortises (B/TB re-reads instead of B/8).
    vmem_cap = _vmem_capacity_bytes()
    w_resident = (not force_stream_w) and (2 * (hp * hp * 2) <= vmem_cap // 2)

    if w_resident:
        # Constant block index -> DMA'd once, stays resident over the grid.
        # (If VMEM-tight, pipeline_mode=pl.Buffered(1) would drop the second
        #  buffer; not needed at these sizes.)
        w_spec = pl.BlockSpec((hp, hp), lambda i, j: (0, 0))
    else:
        w_spec = pl.BlockSpec((hp, tn), lambda i, j: (0, j))

    est = _vmem_estimate_bytes(hp, tb, tn, w_resident)
    vmem_limit = min(vmem_cap,
                     max(32 * 1024 * 1024, int(1.25 * est) + (2 << 20)))

    kernel = functools.partial(_judge_kernel, tb=tb, tn=tn,
                               w_resident=w_resident)

    out = pl.pallas_call(
        kernel,
        out_shape=jax.ShapeDtypeStruct((bp, 128), jnp.int32),
        grid=(n_bt, n_nt),
        in_specs=[
            pl.BlockSpec(memory_space=pltpu.SMEM),             # threshold scalar
            pl.BlockSpec((tb, tn), lambda i, j: (i, j)),       # question slice
            pl.BlockSpec((tb, tn), lambda i, j: (i, j)),       # golden slice
            pl.BlockSpec((tb, hp), lambda i, j: (i, 0)),       # generated (full K)
            w_spec,                                            # evaluator weights
        ],
        out_specs=pl.BlockSpec((tb, 128), lambda i, j: (i, 0)),
        scratch_shapes=[pltpu.VMEM((3 * tb, 128), jnp.float32)],
        compiler_params=pltpu.CompilerParams(
            dimension_semantics=("parallel", "arbitrary"),
            vmem_limit_bytes=vmem_limit),
    )(thr, q_p, gold_p, gen_p, w_prepared)

    return out[:B, 0]   # list-of-judgements equivalent (int32 straight from kernel)


def _reference(question_emb, golden_emb, generated_emb, w, threshold):
    # NOTE: matches the kernel's precision choice (bf16 MXU operands, f32 accum).
    ctx = golden_emb + 0.5 * question_emb
    proj = jnp.dot(generated_emb.astype(jnp.bfloat16), w.astype(jnp.bfloat16),
                   preferred_element_type=jnp.float32)
    dot = jnp.sum(ctx * proj, axis=-1)
    n_ctx = jnp.sum(ctx * ctx, axis=-1)
    n_prj = jnp.sum(proj * proj, axis=-1)
    sim = dot * jax.lax.rsqrt(n_ctx * n_prj + 1e-6)
    return (sim > threshold).astype(jnp.int32)


if __name__ == "__main__":
    # Small shapes that still exercise both grid axes and the TN>128 fold:
    # batch=16 (2 batch tiles of 8), hidden=512 (2 W-column tiles of 256).
    B, H = 16, 512
    key = jax.random.PRNGKey(0)
    kq, kg, ka = jax.random.split(key, 3)

    question_emb = jax.random.normal(kq, (B, H), dtype=jnp.float32)
    golden_emb = jax.random.normal(kg, (B, H), dtype=jnp.float32)
    # Half the batch "copies" the golden answer (should judge correct),
    # half is independent noise (should judge incorrect).
    noise = jax.random.normal(ka, (B, H), dtype=jnp.float32)
    mix = (jnp.arange(B) < B // 2).astype(jnp.float32)[:, None]
    generated_emb = mix * golden_emb + (1.0 - mix) * noise

    # Deterministic "evaluator" weights: near-identity projection.
    w = jnp.eye(H, dtype=jnp.float32) + 0.01 * jnp.ones((H, H), jnp.float32)
    threshold = 0.5  # analogous role to the module's judgement extraction

    tb, tn = _pick_tiles(B, H)
    w_prep = prepare_evaluator_weights(w, tn)   # pad + bf16 cast hoisted, done once

    # Resident-W path (W DMA'd once, stays in VMEM across batch tiles).
    judgements = hallu_evaluator_forward(
        question_emb, golden_emb, generated_emb, w_prep, threshold, tb=tb, tn=tn)
    judgements = jax.block_until_ready(judgements)

    # Streamed-W fallback path (used when W is too big for VMEM).
    judgements_stream = hallu_evaluator_forward(
        question_emb, golden_emb, generated_emb, w_prep, threshold,
        tb=tb, tn=tn, force_stream_w=True)
    judgements_stream = jax.block_until_ready(judgements_stream)

    ref = _reference(question_emb, golden_emb, generated_emb, w, threshold)
    assert judgements.shape == (B,)
    assert judgements.dtype == jnp.int32
    assert jnp.array_equal(judgements, ref), (judgements, ref)
    assert jnp.array_equal(judgements_stream, ref), (judgements_stream, ref)

    print("KERNEL_OK")
</pallas_src>

<mosaic_0001>
module attributes {stable_mosaic.version = 11 : i64} {
  func.func @_judge_kernel(%arg0: i32, %arg1: i32, %arg2: memref<1xf32, #tpu.memory_space<smem>>, %arg3: memref<8x256xf32, #tpu.memory_space<vmem>>, %arg4: memref<8x256xf32, #tpu.memory_space<vmem>>, %arg5: memref<8x512xbf16, #tpu.memory_space<vmem>>, %arg6: memref<512x512xbf16, #tpu.memory_space<vmem>>, %arg7: memref<8x128xi32, #tpu.memory_space<vmem>>, %arg8: memref<24x128xf32, #tpu.memory_space<vmem>>) attributes {dimension_semantics = [#tpu.dimension_semantics<parallel>, #tpu.dimension_semantics<arbitrary>], iteration_bounds = array<i64: 2, 2>, scalar_prefetch = 0 : i64, scratch_operands = 1 : i64, tpu.core_type = #tpu.core_type<tc>, window_params = [{transform_indices = @transform_0, window_bounds = array<i64: 1>}, {transform_indices = @transform_1, window_bounds = array<i64: 8, 256>}, {transform_indices = @transform_2, window_bounds = array<i64: 8, 256>}, {transform_indices = @transform_3, window_bounds = array<i64: 8, 512>}, {pipeline_mode = #tpu.pipeline_mode<synchronous>, transform_indices = @transform_4, window_bounds = array<i64: 512, 512>}, {transform_indices = @transform_5, window_bounds = array<i64: 8, 128>}]} {
    %c0_i32 = arith.constant 0 : i32
    %0 = arith.cmpi eq, %arg1, %c0_i32 : i32
    %1 = arith.extui %0 : i1 to i32
    %c0_i32_0 = arith.constant 0 : i32
    %2 = arith.cmpi ne, %1, %c0_i32_0 : i32
    scf.if %2 {
      %cst_19 = arith.constant 0.000000e+00 : f32
      %38 = vector.broadcast %cst_19 : f32 to vector<24x128xf32>
      %c0_20 = arith.constant 0 : index
      %c0_21 = arith.constant 0 : index
      %39 = vector.load %arg8[%c0_20, %c0_21] : memref<24x128xf32, #tpu.memory_space<vmem>>, vector<24x128xf32>
      tpu.vector_store %arg8[%c0_20, %c0_21], %38 {strides = array<i32>} : memref<24x128xf32, #tpu.memory_space<vmem>>, vector<24x128xf32>,
    } else {
    }
    %c0 = arith.constant 0 : index
    %c0_1 = arith.constant 0 : index
    %3 = vector.load %arg4[%c0, %c0_1] : memref<8x256xf32, #tpu.memory_space<vmem>>, vector<8x256xf32>
    %c0_2 = arith.constant 0 : index
    %c0_3 = arith.constant 0 : index
    %4 = vector.load %arg3[%c0_2, %c0_3] : memref<8x256xf32, #tpu.memory_space<vmem>>, vector<8x256xf32>
    %cst = arith.constant 5.000000e-01 : f32
    %5 = vector.broadcast %cst : f32 to vector<8x256xf32>
    %6 = arith.mulf %5, %4 : vector<8x256xf32>
    %7 = arith.addf %3, %6 : vector<8x256xf32>
    %c256_i32 = arith.constant 256 : i32
    %8 = arith.muli %arg1, %c256_i32 : i32
    %9 = tpu.assume_multiple %8, 256 : i32
    %c0_4 = arith.constant 0 : index
    %10 = arith.index_cast %9 : i32 to index
    %11 = vector.load %arg6[%c0_4, %10] : memref<512x512xbf16, #tpu.memory_space<vmem>>, vector<512x256xbf16>
    %c0_5 = arith.constant 0 : index
    %c0_6 = arith.constant 0 : index
    %12 = vector.load %arg5[%c0_5, %c0_6] : memref<8x512xbf16, #tpu.memory_space<vmem>>, vector<8x512xbf16>
    %cst_7 = arith.constant dense<0.000000e+00> : vector<8x256xf32>
    %13 = tpu.matmul %12, %11, %cst_7 {dimension_numbers = #tpu.dot_dimension_numbers<[1], [0], [0], [1], [0, 0, 1, 1], [], []>} : vector<8x512xbf16>, vector<512x256xbf16>, vector<8x256xf32> -> vector<8x256xf32>
    %c0_8 = arith.constant 0 : index
    %c0_9 = arith.constant 0 : index
    %14 = vector.load %arg8[%c0_8, %c0_9] : memref<24x128xf32, #tpu.memory_space<vmem>>, vector<8x128xf32>
    %15 = arith.mulf %7, %13 : vector<8x256xf32>
    %16 = vector.extract_strided_slice %15 {offsets = [0, 0], sizes = [8, 128], strides = [1, 1]} : vector<8x256xf32> to vector<8x128xf32>
    %17 = vector.extract_strided_slice %15 {offsets = [0, 128], sizes = [8, 128], strides = [1, 1]} : vector<8x256xf32> to vector<8x128xf32>
    %18 = arith.addf %16, %17 : vector<8x128xf32>
    %19 = arith.addf %14, %18 : vector<8x128xf32>
    %c0_10 = arith.constant 0 : index
    %c0_11 = arith.constant 0 : index
    %20 = vector.load %arg8[%c0_10, %c0_11] : memref<24x128xf32, #tpu.memory_space<vmem>>, vector<8x128xf32>
    tpu.vector_store %arg8[%c0_10, %c0_11], %19 {strides = array<i32>} : memref<24x128xf32, #tpu.memory_space<vmem>>, vector<8x128xf32>,
    %c8 = arith.constant 8 : index
    %c0_12 = arith.constant 0 : index
    %21 = vector.load %arg8[%c8, %c0_12] : memref<24x128xf32, #tpu.memory_space<vmem>>, vector<8x128xf32>
    %22 = arith.mulf %7, %7 : vector<8x256xf32>
    %23 = vector.extract_strided_slice %22 {offsets = [0, 0], sizes = [8, 128], strides = [1, 1]} : vector<8x256xf32> to vector<8x128xf32>
    %24 = vector.extract_strided_slice %22 {offsets = [0, 128], sizes = [8, 128], strides = [1, 1]} : vector<8x256xf32> to vector<8x128xf32>
    %25 = arith.addf %23, %24 : vector<8x128xf32>
    %26 = arith.addf %21, %25 : vector<8x128xf32>
    %c8_13 = arith.constant 8 : index
    %c0_14 = arith.constant 0 : index
    %27 = vector.load %arg8[%c8_13, %c0_14] : memref<24x128xf32, #tpu.memory_space<vmem>>, vector<8x128xf32>
    tpu.vector_store %arg8[%c8_13, %c0_14], %26 {strides = array<i32>} : memref<24x128xf32, #tpu.memory_space<vmem>>, vector<8x128xf32>,
    %c16 = arith.constant 16 : index
    %c0_15 = arith.constant 0 : index
    %28 = vector.load %arg8[%c16, %c0_15] : memref<24x128xf32, #tpu.memory_space<vmem>>, vector<8x128xf32>
    %29 = arith.mulf %13, %13 : vector<8x256xf32>
    %30 = vector.extract_strided_slice %29 {offsets = [0, 0], sizes = [8, 128], strides = [1, 1]} : vector<8x256xf32> to vector<8x128xf32>
    %31 = vector.extract_strided_slice %29 {offsets = [0, 128], sizes = [8, 128], strides = [1, 1]} : vector<8x256xf32> to vector<8x128xf32>
    %32 = arith.addf %30, %31 : vector<8x128xf32>
    %33 = arith.addf %28, %32 : vector<8x128xf32>
    %c16_16 = arith.constant 16 : index
    %c0_17 = arith.constant 0 : index
    %34 = vector.load %arg8[%c16_16, %c0_17] : memref<24x128xf32, #tpu.memory_space<vmem>>, vector<8x128xf32>
    tpu.vector_store %arg8[%c16_16, %c0_17], %33 {strides = array<i32>} : memref<24x128xf32, #tpu.memory_space<vmem>>, vector<8x128xf32>,
    %c1_i32 = arith.constant 1 : i32
    %35 = arith.cmpi eq, %arg1, %c1_i32 : i32
    %36 = arith.extui %35 : i1 to i32
    %c0_i32_18 = arith.constant 0 : i32
    %37 = arith.cmpi ne, %36, %c0_i32_18 : i32
    scf.if %37 {
      %c0_19 = arith.constant 0 : index
      %c0_20 = arith.constant 0 : index
      %38 = vector.load %arg8[%c0_19, %c0_20] : memref<24x128xf32, #tpu.memory_space<vmem>>, vector<24x128xf32>
      %cst_21 = arith.constant dense<0.000000e+00> : vector<24xf32>
      %39 = vector.multi_reduction <add>, %38, %cst_21 [1] : vector<24x128xf32> to vector<24xf32>
      %40 = vector.shape_cast %39 : vector<24xf32> to vector<24x1xf32>
      %41 = vector.extract_strided_slice %40 {offsets = [0, 0], sizes = [8, 1], strides = [1, 1]} : vector<24x1xf32> to vector<8x1xf32>
      %42 = vector.extract_strided_slice %40 {offsets = [8, 0], sizes = [8, 1], strides = [1, 1]} : vector<24x1xf32> to vector<8x1xf32>
      %43 = vector.extract_strided_slice %40 {offsets = [16, 0], sizes = [8, 1], strides = [1, 1]} : vector<24x1xf32> to vector<8x1xf32>
      %44 = arith.mulf %42, %43 : vector<8x1xf32>
      %cst_22 = arith.constant 9.99999997E-7 : f32
      %45 = vector.broadcast %cst_22 : f32 to vector<8x1xf32>
      %46 = arith.addf %44, %45 : vector<8x1xf32>
      %47 = math.rsqrt %46 : vector<8x1xf32>
      %48 = arith.mulf %41, %47 : vector<8x1xf32>
      %c0_23 = arith.constant 0 : index
      %49 = memref.load %arg2[%c0_23] : memref<1xf32, #tpu.memory_space<smem>>
      %50 = vector.broadcast %49 : f32 to vector<8x1xf32>
      %51 = arith.cmpf ogt, %48, %50 : vector<8x1xf32>
      %52 = arith.extui %51 : vector<8x1xi1> to vector<8x1xi32>
      %53 = vector.shape_cast %52 : vector<8x1xi32> to vector<8x1xi32>
      %54 = vector.broadcast %53 : vector<8x1xi32> to vector<8x128xi32>
      %c0_24 = arith.constant 0 : index
      %c0_25 = arith.constant 0 : index
      %55 = vector.load %arg7[%c0_24, %c0_25] : memref<8x128xi32, #tpu.memory_space<vmem>>, vector<8x128xi32>
      tpu.vector_store %arg7[%c0_24, %c0_25], %54 {strides = array<i32>} : memref<8x128xi32, #tpu.memory_space<vmem>>, vector<8x128xi32>,
    } else {
    }
    return
  }
  func.func @transform_0(%arg0: i32, %arg1: i32) -> i32 {
    %c0_i32 = arith.constant 0 : i32
    %c0_i32_0 = arith.constant 0 : i32
    return %c0_i32 : i32
  }
  func.func @transform_1(%arg0: i32, %arg1: i32) -> (i32, i32) {
    %c0_i32 = arith.constant 0 : i32
    return %arg0, %arg1 : i32, i32
  }
  func.func @transform_2(%arg0: i32, %arg1: i32) -> (i32, i32) {
    %c0_i32 = arith.constant 0 : i32
    return %arg0, %arg1 : i32, i32
  }
  func.func @transform_3(%arg0: i32, %arg1: i32) -> (i32, i32) {
    %c0_i32 = arith.constant 0 : i32
    %c0_i32_0 = arith.constant 0 : i32
    return %arg0, %c0_i32 : i32, i32
  }
  func.func @transform_4(%arg0: i32, %arg1: i32) -> (i32, i32) {
    %c0_i32 = arith.constant 0 : i32
    %c0_i32_0 = arith.constant 0 : i32
    %c0_i32_1 = arith.constant 0 : i32
    return %c0_i32, %c0_i32_0 : i32, i32
  }
  func.func @transform_5(%arg0: i32, %arg1: i32) -> (i32, i32) {
    %c0_i32 = arith.constant 0 : i32
    %c0_i32_0 = arith.constant 0 : i32
    return %arg0, %c0_i32 : i32, i32
  }
}

</mosaic_0001>

<llo_original>
// kernel: tpu_custom_call.1
$region0: #{tpu_custom_call.1}
  #allocation0 [shape = 'u32[]', space=smem, size = 0x4, offset = 0x4, fixed_abs, tag = 'smem constant byte address 0x4 - core index']
  #allocation1 [shape = 'u32[144,128]{1,0:T(1,128)}', space=vmem, size = 0x12000, scoped, tag = 'internal scratch']
  #allocation2 [shape = 'f32[24,128]{1,0:T(8,128)}', space=vmem, size = 0x3000, scoped, tag = 'scratch operand']
  #allocation3 [shape = 'f32[1]{0:T(128)S(6)}', space=smem, size = 0x200, scoped, tag = 'scoped memory for tpu_custom_call.1']
  %s0 = inlined_call_operand.<no memory space> [shape: f32[1], index: 0, kind: input, shape index: {}]
  %s1 = inlined_call_operand.hbm [shape: f32[16,512], index: 1, kind: input, shape index: {}]
  %s2 = inlined_call_operand.hbm [shape: f32[16,512], index: 2, kind: input, shape index: {}]
  %s3 = inlined_call_operand.hbm [shape: bf16[16,512], index: 3, kind: input, shape index: {}]
  %s4 = inlined_call_operand.hbm [shape: bf16[512,512], index: 4, kind: input, shape index: {}]
  %s5 = inlined_call_operand.hbm [shape: s32[16,128], index: 5, kind: output, shape index: {}]
  %s6 = sld [smem:[#allocation0]]
  $region77: #{tpu_custom_call.1} parent=0
    _
  %s8 = ssub.s32 1, %s6
  %s9 = scalar_select 0, %s8, %s6
  %10 = sst [smem:[#allocation3]] %s0
  $region1: #{tpu_custom_call.1} parent=0
    #allocation4 [shape = 'u8[16384]{0}', space=vmem, size = 0x4000, scoped, tag = 'input window, operand 1']
    #allocation5 [shape = 's32[2]{0}', space=sflag, size = 0x8, scoped, tag = 'scoped memory for tpu_custom_call.1']
    #allocation6 [shape = 's32[2]{0}', space=sflag, size = 0x8, scoped, tag = 'scoped memory for tpu_custom_call.1']
    #allocation7 [shape = 'u8[16384]{0}', space=vmem, size = 0x4000, scoped, tag = 'input window, operand 2']
    #allocation8 [shape = 's32[2]{0}', space=sflag, size = 0x8, scoped, tag = 'scoped memory for tpu_custom_call.1']
    #allocation9 [shape = 'u8[16384]{0}', space=vmem, size = 0x4000, scoped, tag = 'input window, operand 3']
    #allocation10 [shape = 'u8[524288]{0}', space=vmem, size = 0x80000, scoped, tag = 'input window, operand 4, single buffered']
    #allocation11 [shape = 's32[1]{0}', space=sflag, size = 0x4, scoped, tag = 'scoped memory for tpu_custom_call.1']
    #allocation12 [shape = 'u8[8192]{0}', space=vmem, size = 0x2000, scoped, tag = 'output window, operand 0']
    %11 = vsyncpa [#allocation5], 0
    %s12 = scalar_lea.sflag [#allocation5], 1
    %13 = vsyncpa %s12, 0
    %14 = vsyncpa [#allocation8], 0
    %s15 = scalar_lea.sflag [#allocation8], 1
    %16 = vsyncpa %s15, 0
    %17 = vsyncpa [#allocation11], 0
    %18 = vsyncpa [#allocation6], 0
    %s19 = scalar_lea.sflag [#allocation6], 1
    %20 = vsyncpa %s19, 0
    loop: start=0, step=1, limit=6
    $region2: #{tpu_custom_call.1} parent=1 // loop_pre_header
      _
    $region3: #{tpu_custom_call.1} parent=1 // loop_header
      %s22 = sphi 0, %s26
      %p23 = scmp.ge.s32.totalorder %s22, 6
      %s29 = sphi 0, %s41
      %s30 = sphi 0, %s37
      %s31 = sphi 0, %s29
      %s32 = sphi 0, %s30
      %s33 = sphi 0, %s31
      %s34 = sphi 0, %s32
      %s42 = sphi 0, %s42
      %s44 = sphi 0, %s42
      %s45 = sphi 0, %s44
      %s59 = sphi 0, %s45
      %s67 = sphi 0, %s69
      %s70 = sphi 0, %s67
      %s71 = sphi 0, %s70
      %s87 = sphi 0, %s71
      %s95 = sphi 0, %s97
      %s98 = sphi 0, %s95
      %s99 = sphi 0, %s98
      %s115 = sphi 0, %s99
      %s121 = sphi 0, %s123
      %s124 = sphi 0, %s121
      %s125 = sphi 0, %s124
      %s141 = sphi 0, %s125
      %s145 = sphi 0, %s145
      %s147 = sphi 0, %s145
      %s148 = sphi 0, %s147
      %s162 = sphi 0, %s148
      %s168 = sphi 0, %s170
      %s171 = sphi 0, %s168
      %s172 = sphi 0, %s171
      %s188 = sphi 0, %s172
    $region4: #{tpu_custom_call.1} parent=1 // loop_header_branch
      %25 = sbr.rel (%p23) target = $region8
    $region5: #{tpu_custom_call.1} parent=1 // loop_body
      %s27 = ssub.s32 %s22, 1
      %s28 = ssub.s32 %s22, 2
      %s35 = sadd.s32 1, %s30
      %p36 = scmp.ge.s32.totalorder %s35, 2
      %s37 = scalar_select %p36, 0, %s35
      %s38 = sadd.s32 1, %s29
      %s39 = scalar_select %p36, %s38, %s29
      %p40 = scmp.ge.s32.totalorder %s39, 2
      %s41 = scalar_select %p40, 0, %s39
      %s43 = sadd.s32 %s42, 1
      %p46 = scmp.eq.s32.totalorder %s22, 3
      %p47 = scmp.ne.s32.totalorder %s42, %s44
      %p48 = scmp.eq.s32.totalorder %s22, 0
      %p49 = por %p47, %p48
      %p50 = scmp.ne.s32.totalorder %s42, %s44
      %p51 = scmp.eq.s32.totalorder %s27, 3
      %p52 = por %p50, %p51
      %p53 = scmp.ne.s32.totalorder %s44, %s45
      %p54 = scmp.eq.s32.totalorder %s27, 0
      %p55 = por %p53, %p54
      %p56 = scmp.ne.s32.totalorder %s44, %s45
      %p57 = scmp.eq.s32.totalorder %s28, 3
      %p58 = por %p56, %p57
      %p60 = scmp.ne.s32.totalorder %s45, %s59
      %p61 = scmp.eq.s32.totalorder %s28, 0
      %p62 = por %p60, %p61
      %s63 = ssub.s32 %s29, %s41
      %s64 = ssub.s32 %s30, %s37
      %s65 = sor.u32 %s63, %s64
      %p66 = scmp.eq.s32.totalorder %s65, 0
      %s68 = sadd.s32 %s67, 1
      %s69 = scalar_select %p66, %s67, %s68
      %p72 = pneg %p66
      %p73 = scmp.eq.s32.totalorder %s22, 3
      %p74 = por %p72, %p73
      %p75 = scmp.ne.s32.totalorder %s67, %s70
      %p76 = scmp.eq.s32.totalorder %s22, 0
      %p77 = por %p75, %p76
      %p78 = scmp.ne.s32.totalorder %s67, %s70
      %p79 = scmp.eq.s32.totalorder %s27, 3
      %p80 = por %p78, %p79
      %p81 = scmp.ne.s32.totalorder %s70, %s71
      %p82 = scmp.eq.s32.totalorder %s27, 0
      %p83 = por %p81, %p82
      %p84 = scmp.ne.s32.totalorder %s70, %s71
      %p85 = scmp.eq.s32.totalorder %s28, 3
      %p86 = por %p84, %p85
      %p88 = scmp.ne.s32.totalorder %s71, %s87
      %p89 = scmp.eq.s32.totalorder %s28, 0
      %p90 = por %p88, %p89
      %s91 = ssub.s32 %s29, %s41
      %s92 = ssub.s32 %s30, %s37
      %s93 = sor.u32 %s91, %s92
      %p94 = scmp.eq.s32.totalorder %s93, 0
      %s96 = sadd.s32 %s95, 1
      %s97 = scalar_select %p94, %s95, %s96
      %p100 = pneg %p94
      %p101 = scmp.eq.s32.totalorder %s22, 3
      %p102 = por %p100, %p101
      %p103 = scmp.ne.s32.totalorder %s95, %s98
      %p104 = scmp.eq.s32.totalorder %s22, 0
      %p105 = por %p103, %p104
      %p106 = scmp.ne.s32.totalorder %s95, %s98
      %p107 = scmp.eq.s32.totalorder %s27, 3
      %p108 = por %p106, %p107
      %p109 = scmp.ne.s32.totalorder %s98, %s99
      %p110 = scmp.eq.s32.totalorder %s27, 0
      %p111 = por %p109, %p110
      %p112 = scmp.ne.s32.totalorder %s98, %s99
      %p113 = scmp.eq.s32.totalorder %s28, 3
      %p114 = por %p112, %p113
      %p116 = scmp.ne.s32.totalorder %s99, %s115
      %p117 = scmp.eq.s32.totalorder %s28, 0
      %p118 = por %p116, %p117
      %s119 = ssub.s32 %s29, %s41
      %p120 = scmp.eq.s32.totalorder %s119, 0
      %s122 = sadd.s32 %s121, 1
      %s123 = scalar_select %p120, %s121, %s122
      %p126 = pneg %p120
      %p127 = scmp.eq.s32.totalorder %s22, 3
      %p128 = por %p126, %p127
      %p129 = scmp.ne.s32.totalorder %s121, %s124
      %p130 = scmp.eq.s32.totalorder %s22, 0
      %p131 = por %p129, %p130
      %p132 = scmp.ne.s32.totalorder %s121, %s124
      %p133 = scmp.eq.s32.totalorder %s27, 3
      %p134 = por %p132, %p133
      %p135 = scmp.ne.s32.totalorder %s124, %s125
      %p136 = scmp.eq.s32.totalorder %s27, 0
      %p137 = por %p135, %p136
      %p138 = scmp.ne.s32.totalorder %s124, %s125
      %p139 = scmp.eq.s32.totalorder %s28, 3
      %p140 = por %p138, %p139
      %p142 = scmp.ne.s32.totalorder %s125, %s141
      %p143 = scmp.eq.s32.totalorder %s28, 0
      %p144 = por %p142, %p143
      %s146 = sadd.s32 %s145, 1
      %p149 = scmp.eq.s32.totalorder %s22, 3
      %p150 = scmp.ne.s32.totalorder %s145, %s147
      %p151 = scmp.eq.s32.totalorder %s22, 0
      %p152 = por %p150, %p151
      %p153 = scmp.ne.s32.totalorder %s145, %s147
      %p154 = scmp.eq.s32.totalorder %s27, 3
      %p155 = por %p153, %p154
      %p156 = scmp.ne.s32.totalorder %s147, %s148
      %p157 = scmp.eq.s32.totalorder %s27, 0
      %p158 = por %p156, %p157
      %p159 = scmp.ne.s32.totalorder %s147, %s148
      %p160 = scmp.eq.s32.totalorder %s28, 3
      %p161 = por %p159, %p160
      %p163 = scmp.ne.s32.totalorder %s148, %s162
      %p164 = scmp.eq.s32.totalorder %s28, 0
      %p165 = por %p163, %p164
      %s166 = ssub.s32 %s29, %s41
      %p167 = scmp.eq.s32.totalorder %s166, 0
      %s169 = sadd.s32 %s168, 1
      %s170 = scalar_select %p167, %s168, %s169
      %p173 = pneg %p167
      %p174 = scmp.eq.s32.totalorder %s22, 3
      %p175 = por %p173, %p174
      %p176 = scmp.ne.s32.totalorder %s168, %s171
      %p177 = scmp.eq.s32.totalorder %s22, 0
      %p178 = por %p176, %p177
      %p179 = scmp.ne.s32.totalorder %s168, %s171
      %p180 = scmp.eq.s32.totalorder %s27, 3
      %p181 = por %p179, %p180
      %p182 = scmp.ne.s32.totalorder %s171, %s172
      %p183 = scmp.eq.s32.totalorder %s27, 0
      %p184 = por %p182, %p183
      %p185 = scmp.ne.s32.totalorder %s171, %s172
      %p186 = scmp.eq.s32.totalorder %s28, 3
      %p187 = por %p185, %p186
      %p189 = scmp.ne.s32.totalorder %s172, %s188
      %p190 = scmp.eq.s32.totalorder %s28, 0
      %p191 = por %p189, %p190
      %p192 = scmp.le.s32.totalorder 1, %s22
      %p193 = scmp.lt.s32.totalorder %s22, 5
      %p194 = pnand %p192, %p193
      %p195 = pneg %p194
      // Predicated region
      $region9: #{tpu_custom_call.1} parent=5 // pred_check
        _
      $region10: #{tpu_custom_call.1} parent=5 // pred_check_branch
        %197 = sbr.rel (%p194) target = $region12
      $region11: #{tpu_custom_call.1} parent=5 // pred_region
        %s198 = ssub.s32 %s22, 1
        // Predicated region
        $region13: #{tpu_custom_call.1} parent=11 // pred_check
          %p199 = pneg %p55
        $region14: #{tpu_custom_call.1} parent=11 // pred_check_branch
          %201 = sbr.rel (%p199) target = $region16
        $region15: #{tpu_custom_call.1} parent=11 // pred_region
          _
        $region16: #{tpu_custom_call.1} parent=11 // pred_fallthru
          _
        // Predicated region
        $region17: #{tpu_custom_call.1} parent=11 // pred_check
          %p202 = pneg %p158
        $region18: #{tpu_custom_call.1} parent=11 // pred_check_branch
          %204 = sbr.rel (%p202) target = $region20
        $region19: #{tpu_custom_call.1} parent=11 // pred_region
          %s206 = ssub.s32 16384, 16384
          %207 = vsyncadd [#allocation11], %s206
          %s208 = sshll.u32 [#allocation10], 4
          %s209 = int_to_ptr.vmem [resolvable:$true] %s208
          %214 = dma.hbm_to_vmem [thread:$0]  %s4, 16384, %s209, [#allocation11], 256, 256, 16
        $region20: #{tpu_custom_call.1} parent=11 // pred_fallthru
          _
      $region12: #{tpu_custom_call.1} parent=5 // pred_fallthru
        _
      %p215 = scmp.lt.s32.totalorder %s22, 4
      // Predicated region
      $region21: #{tpu_custom_call.1} parent=5 // pred_check
        %p216 = pneg %p215
      $region22: #{tpu_custom_call.1} parent=5 // pred_check_branch
        %218 = sbr.rel (%p216) target = $region24
      $region23: #{tpu_custom_call.1} parent=5 // pred_region
        // Predicated region
        $region25: #{tpu_custom_call.1} parent=23 // pred_check
          %p219 = pneg %p77
        $region26: #{tpu_custom_call.1} parent=23 // pred_check_branch
          %221 = sbr.rel (%p219) target = $region28
        $region27: #{tpu_custom_call.1} parent=23 // pred_region
          %s222 = sand.u32 %s67, 1
          %s223 = scalar_lea.sflag [#allocation5], %s222
          %s224 = sand.u32 %s67, 1
          %s225 = smul.addr %s224, 16
          %s226 = scalar_lea.vmem [#allocation4], %s225
          %s227 = smul.u32 2, %s30
          %s229 = ssub.s32 256, 256
          %230 = vsyncadd %s223, %s229
          %s231 = smul.addr %s29, 4
          %s232 = sadd.s32 %s227, %s231
          %s233 = smul.addr %s232, 128
          %s234 = scalar_lea.hbm %s1, %s233
          %s236 = sshll.u32 %s226, 4
          %s237 = int_to_ptr.vmem [resolvable:$true] %s236
          %239 = dma.hbm_to_vmem [thread:$0]  %s234, 256, %s237, %s223
        $region28: #{tpu_custom_call.1} parent=23 // pred_fallthru
          _
        // Predicated region
        $region29: #{tpu_custom_call.1} parent=23 // pred_check
          %p240 = pneg %p105
        $region30: #{tpu_custom_call.1} parent=23 // pred_check_branch
          %242 = sbr.rel (%p240) target = $region32
        $region31: #{tpu_custom_call.1} parent=23 // pred_region
          %s243 = sand.u32 %s22, 1
          %s244 = scalar_lea.sflag [#allocation8], %s243
          %s245 = sand.u32 %s95, 1
          %s246 = smul.addr %s245, 16
          %s247 = scalar_lea.vmem [#allocation7], %s246
          %s248 = smul.u32 2, %s30
          %s250 = ssub.s32 256, 256
          %251 = vsyncadd %s244, %s250
          %s252 = smul.addr %s29, 4
          %s253 = sadd.s32 %s248, %s252
          %s254 = smul.addr %s253, 128
          %s255 = scalar_lea.hbm %s2, %s254
          %s257 = sshll.u32 %s247, 4
          %s258 = int_to_ptr.vmem [resolvable:$true] %s257
          %260 = dma.hbm_to_vmem [thread:$0]  %s255, 256, %s258, %s244
        $region32: #{tpu_custom_call.1} parent=23 // pred_fallthru
          _
        // Predicated region
        $region33: #{tpu_custom_call.1} parent=23 // pred_check
          %p261 = pneg %p131
        $region34: #{tpu_custom_call.1} parent=23 // pred_check_branch
          %263 = sbr.rel (%p261) target = $region36
        $region35: #{tpu_custom_call.1} parent=23 // pred_region
          %s264 = sand.u32 %s22, 1
          %s265 = scalar_lea.sflag [#allocation8], %s264
          %s266 = sand.u32 %s121, 1
          %s267 = smul.addr %s266, 16
          %s268 = scalar_lea.vmem [#allocation9], %s267
          %s270 = ssub.s32 256, 256
          %271 = vsyncadd %s265, %s270
          %s272 = smul.addr %s29, 4
          %s273 = smul.addr %s272, 64
          %s274 = scalar_lea.hbm %s3, %s273
          %s276 = sshll.u32 %s268, 4
          %s277 = int_to_ptr.vmem [resolvable:$true] %s276
          %279 = dma.hbm_to_vmem [thread:$0]  %s274, 256, %s277, %s265
        $region36: #{tpu_custom_call.1} parent=23 // pred_fallthru
          _
      $region24: #{tpu_custom_call.1} parent=5 // pred_fallthru
        _
      %p280 = scmp.le.s32.totalorder 1, %s22
      %p281 = scmp.lt.s32.totalorder %s22, 5
      %p282 = pnand %p280, %p281
      %p283 = pneg %p282
      // Predicated region
      $region37: #{tpu_custom_call.1} parent=5 // pred_check
        _
      $region38: #{tpu_custom_call.1} parent=5 // pred_check_branch
        %285 = sbr.rel (%p282) target = $region40
      $region39: #{tpu_custom_call.1} parent=5 // pred_region
        %s286 = ssub.s32 %s22, 1
        %s287 = sand.u32 %s70, 1
        %s288 = scalar_lea.sflag [#allocation5], %s287
        %s289 = sand.u32 %s70, 1
        %s290 = smul.addr %s289, 16
        %s291 = scalar_lea.vmem [#allocation4], %s290
        // Predicated region
        $region41: #{tpu_custom_call.1} parent=39 // pred_check
          %p292 = pneg %p83
        $region42: #{tpu_custom_call.1} parent=39 // pred_check_branch
          %294 = sbr.rel (%p292) target = $region44
        $region43: #{tpu_custom_call.1} parent=39 // pred_region
          %295 = dma.done %s288, 256
        $region44: #{tpu_custom_call.1} parent=39 // pred_fallthru
          _
        %s296 = sand.u32 %s27, 1
        %s297 = scalar_lea.sflag [#allocation8], %s296
        %s298 = sand.u32 %s98, 1
        %s299 = smul.addr %s298, 16
        %s300 = scalar_lea.vmem [#allocation7], %s299
        // Predicated region
        $region45: #{tpu_custom_call.1} parent=39 // pred_check
          %p301 = pneg %p111
        $region46: #{tpu_custom_call.1} parent=39 // pred_check_branch
          %303 = sbr.rel (%p301) target = $region48
        $region47: #{tpu_custom_call.1} parent=39 // pred_region
          %304 = dma.done %s297, 256
        $region48: #{tpu_custom_call.1} parent=39 // pred_fallthru
          _
        %s305 = sand.u32 %s27, 1
        %s306 = scalar_lea.sflag [#allocation8], %s305
        %s307 = sand.u32 %s124, 1
        %s308 = smul.addr %s307, 16
        %s309 = scalar_lea.vmem [#allocation9], %s308
        // Predicated region
        $region49: #{tpu_custom_call.1} parent=39 // pred_check
          %p310 = pneg %p137
        $region50: #{tpu_custom_call.1} parent=39 // pred_check_branch
          %312 = sbr.rel (%p310) target = $region52
        $region51: #{tpu_custom_call.1} parent=39 // pred_region
          %313 = dma.done %s306, 256
        $region52: #{tpu_custom_call.1} parent=39 // pred_fallthru
          _
        // Predicated region
        $region53: #{tpu_custom_call.1} parent=39 // pred_check
          %p314 = pneg %p158
        $region54: #{tpu_custom_call.1} parent=39 // pred_check_branch
          %316 = sbr.rel (%p314) target = $region56
        $region55: #{tpu_custom_call.1} parent=39 // pred_region
          %317 = dma.done [#allocation11], 16384
        $region56: #{tpu_custom_call.1} parent=39 // pred_fallthru
          _
        %p318 = pneg %p55
        %p319 = pneg %p52
        %s320 = sand.u32 %s70, 1
        %s321 = scalar_lea.sflag [#allocation5], %s320
        %s322 = sand.u32 %s70, 1
        %s323 = smul.addr %s322, 16
        %s324 = scalar_lea.vmem [#allocation4], %s323
        %p325 = pneg %p83
        %p326 = pneg %p80
        %s327 = sand.u32 %s27, 1
        %s328 = scalar_lea.sflag [#allocation8], %s327
        %s329 = sand.u32 %s98, 1
        %s330 = smul.addr %s329, 16
        %s331 = scalar_lea.vmem [#allocation7], %s330
        %p332 = pneg %p111
        %p333 = pneg %p108
        %s334 = sand.u32 %s27, 1
        %s335 = scalar_lea.sflag [#allocation8], %s334
        %s336 = sand.u32 %s124, 1
        %s337 = smul.addr %s336, 16
        %s338 = scalar_lea.vmem [#allocation9], %s337
        %p339 = pneg %p137
        %p340 = pneg %p134
        %p341 = pneg %p158
        %p342 = pneg %p155
        %p343 = pneg %p184
        %p344 = pneg %p181
        %s345 = sand.u32 %s171, 1
        %s346 = scalar_lea.sflag [#allocation6], %s345
        %s347 = sand.u32 %s171, 1
        %s348 = smul.addr %s347, 8
        %s349 = scalar_lea.vmem [#allocation12], %s348
        %s350 = smul.u32 2, %s32
        %s351 = smul.u32 2, %s32
        %p352 = scmp.eq.s32.totalorder %s32, 0
        // Predicated region
        $region57: #{tpu_custom_call.1} parent=39 // pred_check
          %p353 = pneg %p352
        $region58: #{tpu_custom_call.1} parent=39 // pred_check_branch
          %355 = sbr.rel (%p353) target = $region60
        $region59: #{tpu_custom_call.1} parent=39 // pred_region
          %356 = vst [vmem:[#allocation2] sm:$0xff] 0.0
          %357 = vst [vmem:[#allocation2 + $0x8] sm:$0xff] 0.0
          %358 = vst [vmem:[#allocation2 + $0x10] sm:$0xff] 0.0
        $region60: #{tpu_custom_call.1} parent=39 // pred_fallthru
          _
        %v359 = vld [vmem:[%s300] sm:$0xff]
        %v360 = vld [vmem:[%s300 + $0x8] sm:$0xff]
        %v361 = vld [vmem:[%s291] sm:$0xff]
        %v362 = vld [vmem:[%s291 + $0x8] sm:$0xff]
        %v363 = vmul.f32 %v361, 0.5
        %v364 = vmul.f32 %v362, 0.5
        %v365 = vadd.f32 %v359, %v363
        %v366 = vadd.f32 %v360, %v364
        %s367 = smul.u32 %s32, 256
        %s368 = sshra.s32 %s367, 7
        %s369 = sand.u32 %s367, 127
        %s370 = smul.addr %s368, 4
        %s371 = scalar_lea.vmem [#allocation10], %s370
        %v372 = vld [vmem:[%s371] sm:$0xff]
        %v373 = vld [vmem:[%s371 + $0x10] sm:$0xff]
        %v374 = vld [vmem:[%s371 + $0x20] sm:$0xff]
        %v375 = vld [vmem:[%s371 + $0x30] sm:$0xff]
        %v376 = vld [vmem:[%s371 + $0x40] sm:$0xff]
        %v377 = vld [vmem:[%s371 + $0x50] sm:$0xff]
        %v378 = vld [vmem:[%s371 + $0x60] sm:$0xff]
        %v379 = vld [vmem:[%s371 + $0x70] sm:$0xff]
        %v380 = vld [vmem:[%s371 + $0x80] sm:$0xff]
        %v381 = vld [vmem:[%s371 + $0x90] sm:$0xff]
        %v382 = vld [vmem:[%s371 + $0xa0] sm:$0xff]
        %v383 = vld [vmem:[%s371 + $0xb0] sm:$0xff]
        %v384 = vld [vmem:[%s371 + $0xc0] sm:$0xff]
        %v385 = vld [vmem:[%s371 + $0xd0] sm:$0xff]
        %v386 = vld [vmem:[%s371 + $0xe0] sm:$0xff]
        %v387 = vld [vmem:[%s371 + $0xf0] sm:$0xff]
        %v388 = vld [vmem:[%s371 + $0x100] sm:$0xff]
        %v389 = vld [vmem:[%s371 + $0x110] sm:$0xff]
        %v390 = vld [vmem:[%s371 + $0x120] sm:$0xff]
        %v391 = vld [vmem:[%s371 + $0x130] sm:$0xff]
        %v392 = vld [vmem:[%s371 + $0x140] sm:$0xff]
        %v393 = vld [vmem:[%s371 + $0x150] sm:$0xff]
        %v394 = vld [vmem:[%s371 + $0x160] sm:$0xff]
        %v395 = vld [vmem:[%s371 + $0x170] sm:$0xff]
        %v396 = vld [vmem:[%s371 + $0x180] sm:$0xff]
        %v397 = vld [vmem:[%s371 + $0x190] sm:$0xff]
        %v398 = vld [vmem:[%s371 + $0x1a0] sm:$0xff]
        %v399 = vld [vmem:[%s371 + $0x1b0] sm:$0xff]
        %v400 = vld [vmem:[%s371 + $0x1c0] sm:$0xff]
        %v401 = vld [vmem:[%s371 + $0x1d0] sm:$0xff]
        %v402 = vld [vmem:[%s371 + $0x1e0] sm:$0xff]
        %v403 = vld [vmem:[%s371 + $0x1f0] sm:$0xff]
        %v404 = vld [vmem:[%s371 + $0x200] sm:$0xff]
        %v405 = vld [vmem:[%s371 + $0x210] sm:$0xff]
        %v406 = vld [vmem:[%s371 + $0x220] sm:$0xff]
        %v407 = vld [vmem:[%s371 + $0x230] sm:$0xff]
        %v408 = vld [vmem:[%s371 + $0x240] sm:$0xff]
        %v409 = vld [vmem:[%s371 + $0x250] sm:$0xff]
        %v410 = vld [vmem:[%s371 + $0x260] sm:$0xff]
        %v411 = vld [vmem:[%s371 + $0x270] sm:$0xff]
        %v412 = vld [vmem:[%s371 + $0x280] sm:$0xff]
        %v413 = vld [vmem:[%s371 + $0x290] sm:$0xff]
        %v414 = vld [vmem:[%s371 + $0x2a0] sm:$0xff]
        %v415 = vld [vmem:[%s371 + $0x2b0] sm:$0xff]
        %v416 = vld [vmem:[%s371 + $0x2c0] sm:$0xff]
        %v417 = vld [vmem:[%s371 + $0x2d0] sm:$0xff]
        %v418 = vld [vmem:[%s371 + $0x2e0] sm:$0xff]
        %v419 = vld [vmem:[%s371 + $0x2f0] sm:$0xff]
        %v420 = vld [vmem:[%s371 + $0x300] sm:$0xff]
        %v421 = vld [vmem:[%s371 + $0x310] sm:$0xff]
        %v422 = vld [vmem:[%s371 + $0x320] sm:$0xff]
        %v423 = vld [vmem:[%s371 + $0x330] sm:$0xff]
        %v424 = vld [vmem:[%s371 + $0x340] sm:$0xff]
        %v425 = vld [vmem:[%s371 + $0x350] sm:$0xff]
        %v426 = vld [vmem:[%s371 + $0x360] sm:$0xff]
        %v427 = vld [vmem:[%s371 + $0x370] sm:$0xff]
        %v428 = vld [vmem:[%s371 + $0x380] sm:$0xff]
        %v429 = vld [vmem:[%s371 + $0x390] sm:$0xff]
        %v430 = vld [vmem:[%s371 + $0x3a0] sm:$0xff]
        %v431 = vld [vmem:[%s371 + $0x3b0] sm:$0xff]
        %v432 = vld [vmem:[%s371 + $0x3c0] sm:$0xff]
        %v433 = vld [vmem:[%s371 + $0x3d0] sm:$0xff]
        %v434 = vld [vmem:[%s371 + $0x3e0] sm:$0xff]
        %v435 = vld [vmem:[%s371 + $0x3f0] sm:$0xff]
        %v436 = vld [vmem:[%s309] sm:$0xff]
        %v437 = vld [vmem:[%s309 + $0x8] sm:$0xff]
        %v440 = vunpack.c.l.b16 %v436
        %v441 = vunpack.c.h.b16 %v436
        %v442 = vunpack.c.l.b16 %v437
        %v443 = vunpack.c.h.b16 %v437
        %v444 = vpack.c.b16 %v440, %v440
        %v445 = vpack.c.b16 %v441, %v441
        %v446 = vpack.c.b16 %v442, %v442
        %v447 = vpack.c.b16 %v443, %v443
        %v516 = vunpack.c.l.b16 %v372
        %v517 = vunpack.c.h.b16 %v372
        %v518 = vunpack.c.l.b16 %v373
        %v519 = vunpack.c.h.b16 %v373
        %v520 = vunpack.c.l.b16 %v374
        %v521 = vunpack.c.h.b16 %v374
        %v522 = vunpack.c.l.b16 %v375
        %v523 = vunpack.c.h.b16 %v375
        %v524 = vunpack.c.l.b16 %v376
        %v525 = vunpack.c.h.b16 %v376
        %v526 = vunpack.c.l.b16 %v377
        %v527 = vunpack.c.h.b16 %v377
        %v528 = vunpack.c.l.b16 %v378
        %v529 = vunpack.c.h.b16 %v378
        %v530 = vunpack.c.l.b16 %v379
        %v531 = vunpack.c.h.b16 %v379
        %v532 = vunpack.c.l.b16 %v380
        %v533 = vunpack.c.h.b16 %v380
        %v534 = vunpack.c.l.b16 %v381
        %v535 = vunpack.c.h.b16 %v381
        %v536 = vunpack.c.l.b16 %v382
        %v537 = vunpack.c.h.b16 %v382
        %v538 = vunpack.c.l.b16 %v383
        %v539 = vunpack.c.h.b16 %v383
        %v540 = vunpack.c.l.b16 %v384
        %v541 = vunpack.c.h.b16 %v384
        %v542 = vunpack.c.l.b16 %v385
        %v543 = vunpack.c.h.b16 %v385
        %v544 = vunpack.c.l.b16 %v386
        %v545 = vunpack.c.h.b16 %v386
        %v546 = vunpack.c.l.b16 %v387
        %v547 = vunpack.c.h.b16 %v387
        %v548 = vunpack.c.l.b16 %v388
        %v549 = vunpack.c.h.b16 %v388
        %v550 = vunpack.c.l.b16 %v389
        %v551 = vunpack.c.h.b16 %v389
        %v552 = vunpack.c.l.b16 %v390
        %v553 = vunpack.c.h.b16 %v390
        %v554 = vunpack.c.l.b16 %v391
        %v555 = vunpack.c.h.b16 %v391
        %v556 = vunpack.c.l.b16 %v392
        %v557 = vunpack.c.h.b16 %v392
        %v558 = vunpack.c.l.b16 %v393
        %v559 = vunpack.c.h.b16 %v393
        %v560 = vunpack.c.l.b16 %v394
        %v561 = vunpack.c.h.b16 %v394
        %v562 = vunpack.c.l.b16 %v395
        %v563 = vunpack.c.h.b16 %v395
        %v564 = vunpack.c.l.b16 %v396
        %v565 = vunpack.c.h.b16 %v396
        %v566 = vunpack.c.l.b16 %v397
        %v567 = vunpack.c.h.b16 %v397
        %v568 = vunpack.c.l.b16 %v398
        %v569 = vunpack.c.h.b16 %v398
        %v570 = vunpack.c.l.b16 %v399
        %v571 = vunpack.c.h.b16 %v399
        %v572 = vunpack.c.l.b16 %v400
        %v573 = vunpack.c.h.b16 %v400
        %v574 = vunpack.c.l.b16 %v401
        %v575 = vunpack.c.h.b16 %v401
        %v576 = vunpack.c.l.b16 %v402
        %v577 = vunpack.c.h.b16 %v402
        %v578 = vunpack.c.l.b16 %v403
        %v579 = vunpack.c.h.b16 %v403
        %v580 = vunpack.c.l.b16 %v404
        %v581 = vunpack.c.h.b16 %v404
        %v582 = vunpack.c.l.b16 %v405
        %v583 = vunpack.c.h.b16 %v405
        %v584 = vunpack.c.l.b16 %v406
        %v585 = vunpack.c.h.b16 %v406
        %v586 = vunpack.c.l.b16 %v407
        %v587 = vunpack.c.h.b16 %v407
        %v588 = vunpack.c.l.b16 %v408
        %v589 = vunpack.c.h.b16 %v408
        %v590 = vunpack.c.l.b16 %v409
        %v591 = vunpack.c.h.b16 %v409
        %v592 = vunpack.c.l.b16 %v410
        %v593 = vunpack.c.h.b16 %v410
        %v594 = vunpack.c.l.b16 %v411
        %v595 = vunpack.c.h.b16 %v411
        %v596 = vunpack.c.l.b16 %v412
        %v597 = vunpack.c.h.b16 %v412
        %v598 = vunpack.c.l.b16 %v413
        %v599 = vunpack.c.h.b16 %v413
        %v600 = vunpack.c.l.b16 %v414
        %v601 = vunpack.c.h.b16 %v414
        %v602 = vunpack.c.l.b16 %v415
        %v603 = vunpack.c.h.b16 %v415
        %v604 = vunpack.c.l.b16 %v416
        %v605 = vunpack.c.h.b16 %v416
        %v606 = vunpack.c.l.b16 %v417
        %v607 = vunpack.c.h.b16 %v417
        %v608 = vunpack.c.l.b16 %v418
        %v609 = vunpack.c.h.b16 %v418
        %v610 = vunpack.c.l.b16 %v419
        %v611 = vunpack.c.h.b16 %v419
        %v612 = vunpack.c.l.b16 %v420
        %v613 = vunpack.c.h.b16 %v420
        %v614 = vunpack.c.l.b16 %v421
        %v615 = vunpack.c.h.b16 %v421
        %v616 = vunpack.c.l.b16 %v422
        %v617 = vunpack.c.h.b16 %v422
        %v618 = vunpack.c.l.b16 %v423
        %v619 = vunpack.c.h.b16 %v423
        %v620 = vunpack.c.l.b16 %v424
        %v621 = vunpack.c.h.b16 %v424
        %v622 = vunpack.c.l.b16 %v425
        %v623 = vunpack.c.h.b16 %v425
        %v624 = vunpack.c.l.b16 %v426
        %v625 = vunpack.c.h.b16 %v426
        %v626 = vunpack.c.l.b16 %v427
        %v627 = vunpack.c.h.b16 %v427
        %v628 = vunpack.c.l.b16 %v428
        %v629 = vunpack.c.h.b16 %v428
        %v630 = vunpack.c.l.b16 %v429
        %v631 = vunpack.c.h.b16 %v429
        %v632 = vunpack.c.l.b16 %v430
        %v633 = vunpack.c.h.b16 %v430
        %v634 = vunpack.c.l.b16 %v431
        %v635 = vunpack.c.h.b16 %v431
        %v636 = vunpack.c.l.b16 %v432
        %v637 = vunpack.c.h.b16 %v432
        %v638 = vunpack.c.l.b16 %v433
        %v639 = vunpack.c.h.b16 %v433
        %v640 = vunpack.c.l.b16 %v434
        %v641 = vunpack.c.h.b16 %v434
        %v642 = vunpack.c.l.b16 %v435
        %v643 = vunpack.c.h.b16 %v435
        %v644 = vpack.c.b16 %v518, %v516
        %v645 = vpack.c.b16 %v519, %v517
        %v646 = vpack.c.b16 %v522, %v520
        %v647 = vpack.c.b16 %v523, %v521
        %v648 = vpack.c.b16 %v526, %v524
        %v649 = vpack.c.b16 %v527, %v525
        %v650 = vpack.c.b16 %v530, %v528
        %v651 = vpack.c.b16 %v531, %v529
        %v652 = vpack.c.b16 %v534, %v532
        %v653 = vpack.c.b16 %v535, %v533
        %v654 = vpack.c.b16 %v538, %v536
        %v655 = vpack.c.b16 %v539, %v537
        %v656 = vpack.c.b16 %v542, %v540
        %v657 = vpack.c.b16 %v543, %v541
        %v658 = vpack.c.b16 %v546, %v544
        %v659 = vpack.c.b16 %v547, %v545
        %v660 = vpack.c.b16 %v550, %v548
        %v661 = vpack.c.b16 %v551, %v549
        %v662 = vpack.c.b16 %v554, %v552
        %v663 = vpack.c.b16 %v555, %v553
        %v664 = vpack.c.b16 %v558, %v556
        %v665 = vpack.c.b16 %v559, %v557
        %v666 = vpack.c.b16 %v562, %v560
        %v667 = vpack.c.b16 %v563, %v561
        %v668 = vpack.c.b16 %v566, %v564
        %v669 = vpack.c.b16 %v567, %v565
        %v670 = vpack.c.b16 %v570, %v568
        %v671 = vpack.c.b16 %v571, %v569
        %v672 = vpack.c.b16 %v574, %v572
        %v673 = vpack.c.b16 %v575, %v573
        %v674 = vpack.c.b16 %v578, %v576
        %v675 = vpack.c.b16 %v579, %v577
        %v676 = vpack.c.b16 %v582, %v580
        %v677 = vpack.c.b16 %v583, %v581
        %v678 = vpack.c.b16 %v586, %v584
        %v679 = vpack.c.b16 %v587, %v585
        %v680 = vpack.c.b16 %v590, %v588
        %v681 = vpack.c.b16 %v591, %v589
        %v682 = vpack.c.b16 %v594, %v592
        %v683 = vpack.c.b16 %v595, %v593
        %v684 = vpack.c.b16 %v598, %v596
        %v685 = vpack.c.b16 %v599, %v597
        %v686 = vpack.c.b16 %v602, %v600
        %v687 = vpack.c.b16 %v603, %v601
        %v688 = vpack.c.b16 %v606, %v604
        %v689 = vpack.c.b16 %v607, %v605
        %v690 = vpack.c.b16 %v610, %v608
        %v691 = vpack.c.b16 %v611, %v609
        %v692 = vpack.c.b16 %v614, %v612
        %v693 = vpack.c.b16 %v615, %v613
        %v694 = vpack.c.b16 %v618, %v616
        %v695 = vpack.c.b16 %v619, %v617
        %v696 = vpack.c.b16 %v622, %v620
        %v697 = vpack.c.b16 %v623, %v621
        %v698 = vpack.c.b16 %v626, %v624
        %v699 = vpack.c.b16 %v627, %v625
        %v700 = vpack.c.b16 %v630, %v628
        %v701 = vpack.c.b16 %v631, %v629
        %v702 = vpack.c.b16 %v634, %v632
        %v703 = vpack.c.b16 %v635, %v633
        %v704 = vpack.c.b16 %v638, %v636
        %v705 = vpack.c.b16 %v639, %v637
        %v706 = vpack.c.b16 %v642, %v640
        %v707 = vpack.c.b16 %v643, %v641
        %772 = vmatprep.subr.bf16.mxu0 %v645
        %773 = vmatpush1.bf16.msra.mxu0 %v644
        %774 = vmatprep.subr.bf16.mxu0 %v647
        %775 = vmatpush1.bf16.msra.mxu0 %v646
        %776 = vmatprep.subr.bf16.mxu0 %v649
        %777 = vmatpush1.bf16.msra.mxu0 %v648
        %778 = vmatprep.subr.bf16.mxu0 %v651
        %779 = vmatpush1.bf16.msra.mxu0 %v650
        %780 = vmatprep.subr.bf16.mxu0 %v653
        %781 = vmatpush1.bf16.msra.mxu0 %v652
        %782 = vmatprep.subr.bf16.mxu0 %v655
        %783 = vmatpush1.bf16.msra.mxu0 %v654
        %784 = vmatprep.subr.bf16.mxu0 %v657
        %785 = vmatpush1.bf16.msra.mxu0 %v656
        %786 = vmatprep.subr.bf16.mxu0 %v659
        %787 = vmatpush1.bf16.msra.mxu0 %v658
        %788 = vmatprep.subr.bf16.mxu0 %v661
        %789 = vmatpush1.bf16.msra.mxu0 %v660
        %790 = vmatprep.subr.bf16.mxu0 %v663
        %791 = vmatpush1.bf16.msra.mxu0 %v662
        %792 = vmatprep.subr.bf16.mxu0 %v665
        %793 = vmatpush1.bf16.msra.mxu0 %v664
        %794 = vmatprep.subr.bf16.mxu0 %v667
        %795 = vmatpush1.bf16.msra.mxu0 %v666
        %796 = vmatprep.subr.bf16.mxu0 %v669
        %797 = vmatpush1.bf16.msra.mxu0 %v668
        %798 = vmatprep.subr.bf16.mxu0 %v671
        %799 = vmatpush1.bf16.msra.mxu0 %v670
        %800 = vmatprep.subr.bf16.mxu0 %v673
        %801 = vmatpush1.bf16.msra.mxu0 %v672
        %802 = vmatprep.subr.bf16.mxu0 %v675
        %803 = vmatpush1.bf16.msra.mxu0 %v674
        %804 = vmatprep.mubr.bf16.mxu0 %v445
        %805 = vmatmul.mubr.bf16.gmra.mrb[0].mxu0 %v444
        %v806 = vpop.f32.mrb[0].mxu0
        %v807 = vadd.f32 0.0, %v806
        %v808 = vpop.f32.mrb[0].mxu0
        %v809 = vadd.f32 0.0, %v808
        %v810 = vpop.f32.mrb[0].mxu0
        %v811 = vpop.f32.mrb[0].mxu0
        %812 = vdwg.mxu0
        %813 = vmatprep.subr.bf16.mxu0 %v677
        %814 = vmatpush1.bf16.msra.mxu0 %v676
        %815 = vmatprep.subr.bf16.mxu0 %v679
        %816 = vmatpush1.bf16.msra.mxu0 %v678
        %817 = vmatprep.subr.bf16.mxu0 %v681
        %818 = vmatpush1.bf16.msra.mxu0 %v680
        %819 = vmatprep.subr.bf16.mxu0 %v683
        %820 = vmatpush1.bf16.msra.mxu0 %v682
        %821 = vmatprep.subr.bf16.mxu0 %v685
        %822 = vmatpush1.bf16.msra.mxu0 %v684
        %823 = vmatprep.subr.bf16.mxu0 %v687
        %824 = vmatpush1.bf16.msra.mxu0 %v686
        %825 = vmatprep.subr.bf16.mxu0 %v689
        %826 = vmatpush1.bf16.msra.mxu0 %v688
        %827 = vmatprep.subr.bf16.mxu0 %v691
        %828 = vmatpush1.bf16.msra.mxu0 %v690
        %829 = vmatprep.subr.bf16.mxu0 %v693
        %830 = vmatpush1.bf16.msra.mxu0 %v692
        %831 = vmatprep.subr.bf16.mxu0 %v695
        %832 = vmatpush1.bf16.msra.mxu0 %v694
        %833 = vmatprep.subr.bf16.mxu0 %v697
        %834 = vmatpush1.bf16.msra.mxu0 %v696
        %835 = vmatprep.subr.bf16.mxu0 %v699
        %836 = vmatpush1.bf16.msra.mxu0 %v698
        %837 = vmatprep.subr.bf16.mxu0 %v701
        %838 = vmatpush1.bf16.msra.mxu0 %v700
        %839 = vmatprep.subr.bf16.mxu0 %v703
        %840 = vmatpush1.bf16.msra.mxu0 %v702
        %841 = vmatprep.subr.bf16.mxu0 %v705
        %842 = vmatpush1.bf16.msra.mxu0 %v704
        %843 = vmatprep.subr.bf16.mxu0 %v707
        %844 = vmatpush1.bf16.msra.mxu0 %v706
        %845 = vmatprep.mubr.bf16.mxu0 %v447
        %846 = vmatmul.mubr.bf16.gmra.mrb[0].mxu0 %v446
        %v847 = vpop.f32.mrb[0].mxu0
        %v848 = vadd.f32 %v807, %v847
        %v849 = vpop.f32.mrb[0].mxu0
        %v850 = vadd.f32 %v809, %v849
        %v851 = vpop.f32.mrb[0].mxu0
        %v852 = vpop.f32.mrb[0].mxu0
        %853 = vdwg.mxu0
        %v854 = vld [vmem:[#allocation2] sm:$0xff]
        %v855 = vmul.f32 %v365, %v848
        %v856 = vmul.f32 %v366, %v850
        %v857 = vadd.f32 %v855, %v856
        %v858 = vadd.f32 %v854, %v857
        %859 = vst [vmem:[#allocation2] sm:$0xff] %v858
        %v860 = vld [vmem:[#allocation2 + $0x8] sm:$0xff]
        %v861 = vmul.f32 %v365, %v365
        %v862 = vmul.f32 %v366, %v366
        %v863 = vadd.f32 %v861, %v862
        %v864 = vadd.f32 %v860, %v863
        %865 = vst [vmem:[#allocation2 + $0x8] sm:$0xff] %v864
        %v866 = vld [vmem:[#allocation2 + $0x10] sm:$0xff]
        %v867 = vmul.f32 %v848, %v848
        %v868 = vmul.f32 %v850, %v850
        %v869 = vadd.f32 %v867, %v868
        %v870 = vadd.f32 %v866, %v869
        %871 = vst [vmem:[#allocation2 + $0x10] sm:$0xff] %v870
        %p872 = scmp.eq.s32.totalorder %s32, 1
        // Predicated region
        $region61: #{tpu_custom_call.1} parent=39 // pred_check
          %p873 = pneg %p872
        $region62: #{tpu_custom_call.1} parent=39 // pred_check_branch
          %875 = sbr.rel (%p873) target = $region64
        $region63: #{tpu_custom_call.1} parent=39 // pred_region
          %v876 = vld [vmem:[#allocation2] sm:$0xff]
          %v877 = vld [vmem:[#allocation2 + $0x8] sm:$0xff]
          %v878 = vld [vmem:[#allocation2 + $0x10] sm:$0xff]
          %879 = vadd.xlane.f32.xlu0 %v876
          %v880 = vpop.xlane.xlu0 %879
          %881 = vadd.xlane.f32.xlu0 %v877
          %v882 = vpop.xlane.xlu0 %881
          %883 = vadd.xlane.f32.xlu0 %v878
          %v884 = vpop.xlane.xlu0 %883
          %v885 = vmul.f32 %v882, %v884
          %v886 = vadd.f32 %v885, 1e-06
          %v887 = vrsqrt.pop %v886
          %v888 = vmul.f32 %v880, %v887
          %s889 = sld [smem:[#allocation3]]
          %v890 = vstv %s889
          %vm891 = vcmp.gt.f32.partialorder %v888, %v890
          %v892 = vsel %vm891, 1, 0
          %893 = vst [vmem:[%s349] sm:$0xff] %v892
        $region64: #{tpu_custom_call.1} parent=39 // pred_fallthru
          _
        %s894 = sand.u32 %s171, 1
        %s895 = scalar_lea.sflag [#allocation6], %s894
        %s896 = sand.u32 %s171, 1
        %s897 = smul.addr %s896, 8
        %s898 = scalar_lea.vmem [#allocation12], %s897
        // Predicated region
        $region65: #{tpu_custom_call.1} parent=39 // pred_check
          %p899 = pneg %p181
        $region66: #{tpu_custom_call.1} parent=39 // pred_check_branch
          %901 = sbr.rel (%p899) target = $region68
        $region67: #{tpu_custom_call.1} parent=39 // pred_region
          %s903 = ssub.s32 128, 128
          %904 = vsyncadd %s895, %s903
          %s905 = smul.addr %s31, 128
          %s906 = scalar_lea.hbm %s5, %s905
          %s908 = sshll.u32 %s898, 4
          %s909 = int_to_ptr.vmem [resolvable:$true] %s908
          %911 = dma.vmem_to_hbm [thread:$0]  %s909, 128, %s906, %s895
        $region68: #{tpu_custom_call.1} parent=39 // pred_fallthru
          _
      $region40: #{tpu_custom_call.1} parent=5 // pred_fallthru
        _
      %p912 = scmp.le.s32.totalorder 2, %s22
      // Predicated region
      $region69: #{tpu_custom_call.1} parent=5 // pred_check
        %p913 = pneg %p912
      $region70: #{tpu_custom_call.1} parent=5 // pred_check_branch
        %915 = sbr.rel (%p913) target = $region72
      $region71: #{tpu_custom_call.1} parent=5 // pred_region
        %s916 = ssub.s32 %s22, 2
        // Predicated region
        $region73: #{tpu_custom_call.1} parent=71 // pred_check
          %p917 = pneg %p187
        $region74: #{tpu_custom_call.1} parent=71 // pred_check_branch
          %919 = sbr.rel (%p917) target = $region76
        $region75: #{tpu_custom_call.1} parent=71 // pred_region
          %s920 = sand.u32 %s172, 1
          %s921 = scalar_lea.sflag [#allocation6], %s920
          %s922 = sand.u32 %s172, 1
          %s923 = smul.addr %s922, 8
          %s924 = scalar_lea.vmem [#allocation12], %s923
          %925 = dma.done %s921, 128
        $region76: #{tpu_custom_call.1} parent=71 // pred_fallthru
          _
      $region72: #{tpu_custom_call.1} parent=5 // pred_fallthru
        _
    $region6: #{tpu_custom_call.1} parent=1 // loop_footer
      %s26 = sadd.s32 1, %s22
    $region7: #{tpu_custom_call.1} parent=1 // loop_footer_branch
      %21 = sbr.rel target = $region3
    $region8: #{tpu_custom_call.1} parent=1 // loop_exit
      _
    %926 = vsyncpa [#allocation5], 1
    %s927 = scalar_lea.sflag [#allocation5], 1
    %928 = vsyncpa %s927, 1
    %929 = vsyncpa [#allocation8], 1
    %s930 = scalar_lea.sflag [#allocation8], 1
    %931 = vsyncpa %s930, 1
    %932 = vsyncpa [#allocation11], 1
    %933 = vsyncpa [#allocation6], 1
    %s934 = scalar_lea.sflag [#allocation6], 1
    %935 = vsyncpa %s934, 1

</llo_original>
